<compile_context>
chip_gen: v5e
topology: v5e:2x2
jax: 0.10.0
libtpu: 0.0.40
codegen_flags: <defaults>
</compile_context>

<pallas_src>
import functools

import jax
import jax.numpy as jnp
from jax.experimental import pallas as pl
from jax.experimental.pallas import tpu as pltpu

HIDDEN = 128


def _round_up(x, m):
    return ((x + m - 1) // m) * m


def _pick_tile(b_pad, tm_cap):
    """Largest multiple-of-8 divisor of b_pad that is <= tm_cap (b_pad % 8 == 0)."""
    best = 8
    d = 8
    cap = min(tm_cap, b_pad)
    while d <= cap:
        if b_pad % d == 0:
            best = d
        d += 8
    return best


def ae_kernel(x_ref,
              w1_ref, b1_ref,
              w2_ref, b2_ref,
              w3_ref, b3_ref,
              w4_ref, b4_ref,
              o_ref):
    """Fused forward for one (TM, D) tile of the batch.

    x_ref  : (TM, D)  f32   (cast to bf16 in-kernel for the MXU)
    w1     : (D, 128) bf16   b1 : (1, 128) f32
    w2, w3 : (128,128) bf16  b2, b3 : (1, 128) f32
    w4     : (128, D) bf16   b4 : (1, D) f32
    o_ref  : (TM, D)  f32 (or bf16 if requested)
    """
    def layer(h_bf16, w_ref, b_ref):
        # bf16 operands into the MXU, f32 accumulation; bias + ReLU in f32
        # (safe on v5e's f32-only VPU, fast on v6e/v7x).
        acc = jnp.dot(h_bf16, w_ref[...], preferred_element_type=jnp.float32)
        return jnp.maximum(acc + b_ref[...], 0.0)

    h0 = x_ref[...].astype(jnp.bfloat16)                 # in-kernel cast (free under DMA bound)
    h = layer(h0, w1_ref, b1_ref)                        # encoder_hidden + relu
    h = layer(h.astype(jnp.bfloat16), w2_ref, b2_ref)    # encoder_output + relu
    h = layer(h.astype(jnp.bfloat16), w3_ref, b3_ref)    # decoder_hidden + relu
    h = layer(h.astype(jnp.bfloat16), w4_ref, b4_ref)    # decoder_output + relu
    o_ref[...] = h.astype(o_ref.dtype)


@functools.partial(jax.jit, static_argnames=("tm", "out_dtype"))
def ae_forward(x, params, *, tm=512, out_dtype=jnp.float32):
    """x: (B, D) float32. params: bf16 (in, out) weights + f32 (1, out) biases."""
    B, D = x.shape
    H = HIDDEN

    # Pad the batch only to a multiple of 8 (sublane), then pick a tile that
    # divides the padded batch -> no tile-sized pad copy, no wasted DMA rows.
    b_pad = _round_up(B, 8)
    if b_pad != B:
        x = jnp.pad(x, ((0, b_pad - B), (0, 0)))

    # Keep grid length >= 2 whenever possible so both v7x TensorCores get work
    # (harmless on single-TC v5e/v6e: per-step overhead is ~0.35 us).
    tm_cap = min(tm, b_pad)
    if b_pad >= 16:
        tm_cap = min(tm_cap, b_pad // 2)
    tm_eff = _pick_tile(b_pad, tm_cap)
    grid = (b_pad // tm_eff,)

    # Weights are expected pre-cast to bf16 (prepare_params); astype is a
    # trace-time no-op in that case, a safety net otherwise.
    w1 = params["w1"].astype(jnp.bfloat16)
    w2 = params["w2"].astype(jnp.bfloat16)
    w3 = params["w3"].astype(jnp.bfloat16)
    w4 = params["w4"].astype(jnp.bfloat16)
    b1, b2, b3, b4 = params["b1"], params["b2"], params["b3"], params["b4"]

    resident = lambda i: (0, 0)   # constant block -> fetched once, stays VMEM-resident
    out_bytes = jnp.dtype(out_dtype).itemsize
    flops = 4 * b_pad * (D * H + H * H)                   # 2 MACs * (D*H + H*H + H*H + H*D)/2 per row
    bytes_accessed = (
        b_pad * D * 4                                     # x read (f32, cast in-kernel)
        + b_pad * D * out_bytes                           # output writeback
        + 2 * (D * H + H * H + H * H + H * D)             # bf16 weights
        + 4 * (H + H + H + D)                             # f32 biases
    )

    out = pl.pallas_call(
        ae_kernel,
        out_shape=jax.ShapeDtypeStruct((b_pad, D), out_dtype),
        grid_spec=pltpu.PrefetchScalarGridSpec(
            num_scalar_prefetch=0,
            grid=grid,
            in_specs=[
                pl.BlockSpec((tm_eff, D), lambda i: (i, 0)),  # x tiles stream (double-buffered)
                pl.BlockSpec((D, H), resident),               # w1
                pl.BlockSpec((1, H), resident),               # b1
                pl.BlockSpec((H, H), resident),               # w2
                pl.BlockSpec((1, H), resident),               # b2
                pl.BlockSpec((H, H), resident),               # w3
                pl.BlockSpec((1, H), resident),               # b3
                pl.BlockSpec((H, D), resident),               # w4
                pl.BlockSpec((1, D), resident),               # b4
            ],
            out_specs=pl.BlockSpec((tm_eff, D), lambda i: (i, 0)),
        ),
        compiler_params=pltpu.CompilerParams(
            dimension_semantics=("parallel",),            # batch axis shards over 2 TCs on v7x
        ),
        cost_estimate=pl.CostEstimate(
            flops=flops, transcendentals=0, bytes_accessed=bytes_accessed),
    )(x, w1, b1, w2, b2, w3, b3, w4, b4)

    return out[:B]


def init_params(key, input_shape, hidden=HIDDEN):
    """PyTorch-Linear-shaped f32 parameters, pre-transposed to (in, out)."""
    ks = jax.random.split(key, 8)

    def linear(kw, kb, fan_in, fan_out):
        # torch.nn.Linear default init: U(-1/sqrt(fan_in), 1/sqrt(fan_in))
        bound = 1.0 / jnp.sqrt(jnp.float32(fan_in))
        w = jax.random.uniform(kw, (fan_in, fan_out), jnp.float32, -bound, bound)
        b = jax.random.uniform(kb, (1, fan_out), jnp.float32, -bound, bound)
        return w, b

    w1, b1 = linear(ks[0], ks[1], input_shape, hidden)   # encoder_hidden_layer
    w2, b2 = linear(ks[2], ks[3], hidden, hidden)        # encoder_output_layer
    w3, b3 = linear(ks[4], ks[5], hidden, hidden)        # decoder_hidden_layer
    w4, b4 = linear(ks[6], ks[7], hidden, input_shape)   # decoder_output_layer
    return dict(w1=w1, b1=b1, w2=w2, b2=b2, w3=w3, b3=b3, w4=w4, b4=b4)


def prepare_params(params_f32):
    """One-time cast of the matmul weights to bf16 (biases stay f32)."""
    out = dict(params_f32)
    for k in ("w1", "w2", "w3", "w4"):
        out[k] = params_f32[k].astype(jnp.bfloat16)
    return out


def ae_reference_bf16(x, p):
    """Pure-JAX reference with the same bf16-operand / f32-accumulate recipe."""
    def layer(h, w, b):
        acc = jnp.dot(h.astype(jnp.bfloat16), w.astype(jnp.bfloat16),
                      preferred_element_type=jnp.float32)
        return jnp.maximum(acc + b, 0.0)

    h = layer(x, p["w1"], p["b1"])
    h = layer(h, p["w2"], p["b2"])
    h = layer(h, p["w3"], p["b3"])
    h = layer(h, p["w4"], p["b4"])
    return h


def ae_reference_f32(x, p):
    """Full-precision reference of the PyTorch forward (Linear+ReLU x4)."""
    h = jnp.maximum(x @ p["w1"] + p["b1"], 0.0)
    h = jnp.maximum(h @ p["w2"] + p["b2"], 0.0)
    h = jnp.maximum(h @ p["w3"] + p["b3"], 0.0)
    h = jnp.maximum(h @ p["w4"] + p["b4"], 0.0)
    return h


if __name__ == "__main__":
    key = jax.random.PRNGKey(0)
    k_x, k_p = jax.random.split(key)

    batch = 32             # small batch -> still exercises a 2-step grid (tile=16)
    input_shape = 256      # kwargs['input_shape']

    x = jax.random.normal(k_x, (batch, input_shape), jnp.float32)
    params_f32 = init_params(k_p, input_shape)
    params = prepare_params(params_f32)          # one-time bf16 weight cast

    out = ae_forward(x, params)
    jax.block_until_ready(out)
    assert out.shape == (batch, input_shape)
    assert out.dtype == jnp.float32

    # Precision-matched check (bf16 operands, f32 accumulation).
    ref_bf16 = ae_reference_bf16(x, params_f32)
    assert jnp.allclose(out, ref_bf16, atol=1e-2, rtol=1e-2), "mismatch vs bf16 reference"

    # Sanity check vs the full-f32 PyTorch-equivalent forward (looser tolerance
    # because the kernel feeds bf16 operands to the MXU).
    ref_f32 = ae_reference_f32(x, params_f32)
    assert jnp.allclose(out, ref_f32, atol=5e-2, rtol=5e-2), "mismatch vs f32 reference"

    # Ragged tiny batch: pads only to a multiple of 8, slices back.
    out_small = ae_forward(x[:3], params)
    jax.block_until_ready(out_small)
    assert out_small.shape == (3, input_shape)
    assert jnp.allclose(out_small, ref_bf16[:3], atol=1e-2, rtol=1e-2)

    # Optional reduced-writeback path (bf16 output) — precision trade-off.
    out_bf16 = ae_forward(x, params, out_dtype=jnp.bfloat16)
    jax.block_until_ready(out_bf16)
    assert out_bf16.dtype == jnp.bfloat16
    assert jnp.allclose(out_bf16.astype(jnp.float32), ref_bf16, atol=5e-2, rtol=5e-2)

    print("KERNEL_OK")
</pallas_src>

<mosaic_0001>
module attributes {stable_mosaic.version = 11 : i64} {
  func.func @ae_kernel(%arg0: i32, %arg1: memref<16x256xf32, #tpu.memory_space<vmem>>, %arg2: memref<256x128xbf16, #tpu.memory_space<vmem>>, %arg3: memref<1x128xf32, #tpu.memory_space<vmem>>, %arg4: memref<128x128xbf16, #tpu.memory_space<vmem>>, %arg5: memref<1x128xf32, #tpu.memory_space<vmem>>, %arg6: memref<128x128xbf16, #tpu.memory_space<vmem>>, %arg7: memref<1x128xf32, #tpu.memory_space<vmem>>, %arg8: memref<128x256xbf16, #tpu.memory_space<vmem>>, %arg9: memref<1x256xf32, #tpu.memory_space<vmem>>, %arg10: memref<16x256xf32, #tpu.memory_space<vmem>>) attributes {dimension_semantics = [#tpu.dimension_semantics<parallel>], iteration_bounds = array<i64: 2>, scalar_prefetch = 0 : i64, scratch_operands = 0 : i64, tpu.core_type = #tpu.core_type<tc>, window_params = [{transform_indices = @transform_0, window_bounds = array<i64: 16, 256>}, {pipeline_mode = #tpu.pipeline_mode<synchronous>, transform_indices = @transform_1, window_bounds = array<i64: 256, 128>}, {pipeline_mode = #tpu.pipeline_mode<synchronous>, transform_indices = @transform_2, window_bounds = array<i64: 1, 128>}, {pipeline_mode = #tpu.pipeline_mode<synchronous>, transform_indices = @transform_3, window_bounds = array<i64: 128, 128>}, {pipeline_mode = #tpu.pipeline_mode<synchronous>, transform_indices = @transform_4, window_bounds = array<i64: 1, 128>}, {pipeline_mode = #tpu.pipeline_mode<synchronous>, transform_indices = @transform_5, window_bounds = array<i64: 128, 128>}, {pipeline_mode = #tpu.pipeline_mode<synchronous>, transform_indices = @transform_6, window_bounds = array<i64: 1, 128>}, {pipeline_mode = #tpu.pipeline_mode<synchronous>, transform_indices = @transform_7, window_bounds = array<i64: 128, 256>}, {pipeline_mode = #tpu.pipeline_mode<synchronous>, transform_indices = @transform_8, window_bounds = array<i64: 1, 256>}, {transform_indices = @transform_9, window_bounds = array<i64: 16, 256>}]} {
    %c0 = arith.constant 0 : index
    %c0_0 = arith.constant 0 : index
    %0 = vector.load %arg1[%c0, %c0_0] : memref<16x256xf32, #tpu.memory_space<vmem>>, vector<16x256xf32>
    %1 = arith.truncf %0 : vector<16x256xf32> to vector<16x256xbf16>
    %c0_1 = arith.constant 0 : index
    %c0_2 = arith.constant 0 : index
    %2 = vector.load %arg2[%c0_1, %c0_2] : memref<256x128xbf16, #tpu.memory_space<vmem>>, vector<256x128xbf16>
    %cst = arith.constant dense<0.000000e+00> : vector<16x128xf32>
    %3 = tpu.matmul %1, %2, %cst {dimension_numbers = #tpu.dot_dimension_numbers<[1], [0], [0], [1], [0, 0, 1, 1], [], []>} : vector<16x256xbf16>, vector<256x128xbf16>, vector<16x128xf32> -> vector<16x128xf32>
    %c0_3 = arith.constant 0 : index
    %c0_4 = arith.constant 0 : index
    %4 = vector.load %arg3[%c0_3, %c0_4] : memref<1x128xf32, #tpu.memory_space<vmem>>, vector<1x128xf32>
    %5 = vector.broadcast %4 : vector<1x128xf32> to vector<16x128xf32>
    %6 = arith.addf %3, %5 : vector<16x128xf32>
    %cst_5 = arith.constant 0.000000e+00 : f32
    %7 = vector.broadcast %cst_5 : f32 to vector<16x128xf32>
    %8 = arith.maximumf %6, %7 : vector<16x128xf32>
    %9 = arith.truncf %8 : vector<16x128xf32> to vector<16x128xbf16>
    %c0_6 = arith.constant 0 : index
    %c0_7 = arith.constant 0 : index
    %10 = vector.load %arg4[%c0_6, %c0_7] : memref<128x128xbf16, #tpu.memory_space<vmem>>, vector<128x128xbf16>
    %cst_8 = arith.constant dense<0.000000e+00> : vector<16x128xf32>
    %11 = tpu.matmul %9, %10, %cst_8 {dimension_numbers = #tpu.dot_dimension_numbers<[1], [0], [0], [1], [0, 0, 1, 1], [], []>} : vector<16x128xbf16>, vector<128x128xbf16>, vector<16x128xf32> -> vector<16x128xf32>
    %c0_9 = arith.constant 0 : index
    %c0_10 = arith.constant 0 : index
    %12 = vector.load %arg5[%c0_9, %c0_10] : memref<1x128xf32, #tpu.memory_space<vmem>>, vector<1x128xf32>
    %13 = vector.broadcast %12 : vector<1x128xf32> to vector<16x128xf32>
    %14 = arith.addf %11, %13 : vector<16x128xf32>
    %cst_11 = arith.constant 0.000000e+00 : f32
    %15 = vector.broadcast %cst_11 : f32 to vector<16x128xf32>
    %16 = arith.maximumf %14, %15 : vector<16x128xf32>
    %17 = arith.truncf %16 : vector<16x128xf32> to vector<16x128xbf16>
    %c0_12 = arith.constant 0 : index
    %c0_13 = arith.constant 0 : index
    %18 = vector.load %arg6[%c0_12, %c0_13] : memref<128x128xbf16, #tpu.memory_space<vmem>>, vector<128x128xbf16>
    %cst_14 = arith.constant dense<0.000000e+00> : vector<16x128xf32>
    %19 = tpu.matmul %17, %18, %cst_14 {dimension_numbers = #tpu.dot_dimension_numbers<[1], [0], [0], [1], [0, 0, 1, 1], [], []>} : vector<16x128xbf16>, vector<128x128xbf16>, vector<16x128xf32> -> vector<16x128xf32>
    %c0_15 = arith.constant 0 : index
    %c0_16 = arith.constant 0 : index
    %20 = vector.load %arg7[%c0_15, %c0_16] : memref<1x128xf32, #tpu.memory_space<vmem>>, vector<1x128xf32>
    %21 = vector.broadcast %20 : vector<1x128xf32> to vector<16x128xf32>
    %22 = arith.addf %19, %21 : vector<16x128xf32>
    %cst_17 = arith.constant 0.000000e+00 : f32
    %23 = vector.broadcast %cst_17 : f32 to vector<16x128xf32>
    %24 = arith.maximumf %22, %23 : vector<16x128xf32>
    %25 = arith.truncf %24 : vector<16x128xf32> to vector<16x128xbf16>
    %c0_18 = arith.constant 0 : index
    %c0_19 = arith.constant 0 : index
    %26 = vector.load %arg8[%c0_18, %c0_19] : memref<128x256xbf16, #tpu.memory_space<vmem>>, vector<128x256xbf16>
    %cst_20 = arith.constant dense<0.000000e+00> : vector<16x256xf32>
    %27 = tpu.matmul %25, %26, %cst_20 {dimension_numbers = #tpu.dot_dimension_numbers<[1], [0], [0], [1], [0, 0, 1, 1], [], []>} : vector<16x128xbf16>, vector<128x256xbf16>, vector<16x256xf32> -> vector<16x256xf32>
    %c0_21 = arith.constant 0 : index
    %c0_22 = arith.constant 0 : index
    %28 = vector.load %arg9[%c0_21, %c0_22] : memref<1x256xf32, #tpu.memory_space<vmem>>, vector<1x256xf32>
    %29 = vector.broadcast %28 : vector<1x256xf32> to vector<16x256xf32>
    %30 = arith.addf %27, %29 : vector<16x256xf32>
    %cst_23 = arith.constant 0.000000e+00 : f32
    %31 = vector.broadcast %cst_23 : f32 to vector<16x256xf32>
    %32 = arith.maximumf %30, %31 : vector<16x256xf32>
    %c0_24 = arith.constant 0 : index
    %c0_25 = arith.constant 0 : index
    %33 = vector.load %arg10[%c0_24, %c0_25] : memref<16x256xf32, #tpu.memory_space<vmem>>, vector<16x256xf32>
    tpu.vector_store %arg10[%c0_24, %c0_25], %32 {strides = array<i32>} : memref<16x256xf32, #tpu.memory_space<vmem>>, vector<16x256xf32>,
    return
  }
  func.func @transform_0(%arg0: i32) -> (i32, i32) {
    %c0_i32 = arith.constant 0 : i32
    %c0_i32_0 = arith.constant 0 : i32
    return %arg0, %c0_i32 : i32, i32
  }
  func.func @transform_1(%arg0: i32) -> (i32, i32) {
    %c0_i32 = arith.constant 0 : i32
    %c0_i32_0 = arith.constant 0 : i32
    %c0_i32_1 = arith.constant 0 : i32
    return %c0_i32, %c0_i32_0 : i32, i32
  }
  func.func @transform_2(%arg0: i32) -> (i32, i32) {
    %c0_i32 = arith.constant 0 : i32
    %c0_i32_0 = arith.constant 0 : i32
    %c0_i32_1 = arith.constant 0 : i32
    return %c0_i32, %c0_i32_0 : i32, i32
  }
  func.func @transform_3(%arg0: i32) -> (i32, i32) {
    %c0_i32 = arith.constant 0 : i32
    %c0_i32_0 = arith.constant 0 : i32
    %c0_i32_1 = arith.constant 0 : i32
    return %c0_i32, %c0_i32_0 : i32, i32
  }
  func.func @transform_4(%arg0: i32) -> (i32, i32) {
    %c0_i32 = arith.constant 0 : i32
    %c0_i32_0 = arith.constant 0 : i32
    %c0_i32_1 = arith.constant 0 : i32
    return %c0_i32, %c0_i32_0 : i32, i32
  }
  func.func @transform_5(%arg0: i32) -> (i32, i32) {
    %c0_i32 = arith.constant 0 : i32
    %c0_i32_0 = arith.constant 0 : i32
    %c0_i32_1 = arith.constant 0 : i32
    return %c0_i32, %c0_i32_0 : i32, i32
  }
  func.func @transform_6(%arg0: i32) -> (i32, i32) {
    %c0_i32 = arith.constant 0 : i32
    %c0_i32_0 = arith.constant 0 : i32
    %c0_i32_1 = arith.constant 0 : i32
    return %c0_i32, %c0_i32_0 : i32, i32
  }
  func.func @transform_7(%arg0: i32) -> (i32, i32) {
    %c0_i32 = arith.constant 0 : i32
    %c0_i32_0 = arith.constant 0 : i32
    %c0_i32_1 = arith.constant 0 : i32
    return %c0_i32, %c0_i32_0 : i32, i32
  }
  func.func @transform_8(%arg0: i32) -> (i32, i32) {
    %c0_i32 = arith.constant 0 : i32
    %c0_i32_0 = arith.constant 0 : i32
    %c0_i32_1 = arith.constant 0 : i32
    return %c0_i32, %c0_i32_0 : i32, i32
  }
  func.func @transform_9(%arg0: i32) -> (i32, i32) {
    %c0_i32 = arith.constant 0 : i32
    %c0_i32_0 = arith.constant 0 : i32
    return %arg0, %c0_i32 : i32, i32
  }
}

</mosaic_0001>

<llo_original>
// kernel: ae_forward.1
$region0: #{ae_forward.1}
  #allocation0 [shape = 'u32[]', space=smem, size = 0x4, offset = 0x4, fixed_abs, tag = 'smem constant byte address 0x4 - core index']
  #allocation1 [shape = 'u32[72,128]{1,0:T(1,128)}', space=vmem, size = 0x9000, scoped, tag = 'internal scratch']
  %s0 = inlined_call_operand.hbm [shape: f32[32,256], index: 0, kind: input, shape index: {}]
  %s1 = inlined_call_operand.hbm [shape: bf16[256,128], index: 1, kind: input, shape index: {}]
  %s2 = inlined_call_operand.hbm [shape: f32[1,128], index: 2, kind: input, shape index: {}]
  %s3 = inlined_call_operand.hbm [shape: bf16[128,128], index: 3, kind: input, shape index: {}]
  %s4 = inlined_call_operand.vmem [shape: f32[1,128], index: 4, kind: input, shape index: {}]
  %s5 = inlined_call_operand.hbm [shape: bf16[128,128], index: 5, kind: input, shape index: {}]
  %s6 = inlined_call_operand.hbm [shape: f32[1,128], index: 6, kind: input, shape index: {}]
  %s7 = inlined_call_operand.hbm [shape: bf16[128,256], index: 7, kind: input, shape index: {}]
  %s8 = inlined_call_operand.vmem [shape: f32[1,256], index: 8, kind: input, shape index: {}]
  %s9 = inlined_call_operand.hbm [shape: f32[32,256], index: 9, kind: output, shape index: {}]
  %s10 = sld [smem:[#allocation0]]
  $region97: #{ae_forward.1} parent=0
    _
  %s12 = ssub.s32 1, %s10
  %s13 = scalar_select 0, %s12, %s10
  $region1: #{ae_forward.1} parent=0
    #allocation2 [shape = 'u8[32768]{0}', space=vmem, size = 0x8000, scoped, tag = 'input window, operand 0']
    #allocation3 [shape = 's32[2]{0}', space=sflag, size = 0x8, scoped, tag = 'scoped memory for ae_forward.1']
    #allocation4 [shape = 's32[2]{0}', space=sflag, size = 0x8, scoped, tag = 'scoped memory for ae_forward.1']
    #allocation5 [shape = 'u8[65536]{0}', space=vmem, size = 0x10000, scoped, tag = 'input window, operand 1, single buffered']
    #allocation6 [shape = 's32[1]{0}', space=sflag, size = 0x4, scoped, tag = 'scoped memory for ae_forward.1']
    #allocation7 [shape = 'u8[512]{0}', space=vmem, size = 0x400, scoped, tag = 'input window, operand 2, single buffered']
    #allocation8 [shape = 'u8[32768]{0}', space=vmem, size = 0x8000, scoped, tag = 'input window, operand 3, single buffered']
    #allocation9 [shape = 's32[1]{0}', space=sflag, size = 0x4, scoped, tag = 'scoped memory for ae_forward.1']
    #allocation10 [shape = 'u8[32768]{0}', space=vmem, size = 0x8000, scoped, tag = 'input window, operand 5, single buffered']
    #allocation11 [shape = 'u8[512]{0}', space=vmem, size = 0x400, scoped, tag = 'input window, operand 6, single buffered']
    #allocation12 [shape = 's32[1]{0}', space=sflag, size = 0x4, scoped, tag = 'scoped memory for ae_forward.1']
    #allocation13 [shape = 'u8[65536]{0}', space=vmem, size = 0x10000, scoped, tag = 'input window, operand 7, single buffered']
    #allocation14 [shape = 'u8[32768]{0}', space=vmem, size = 0x8000, scoped, tag = 'output window, operand 0']
    %14 = vsyncpa [#allocation3], 0
    %s15 = scalar_lea.sflag [#allocation3], 1
    %16 = vsyncpa %s15, 0
    %17 = vsyncpa [#allocation6], 0
    %18 = vsyncpa [#allocation9], 0
    %19 = vsyncpa [#allocation12], 0
    %20 = vsyncpa [#allocation4], 0
    %s21 = scalar_lea.sflag [#allocation4], 1
    %22 = vsyncpa %s21, 0
    loop: start=0, step=1, limit=4
    $region2: #{ae_forward.1} parent=1 // loop_pre_header
      _
    $region3: #{ae_forward.1} parent=1 // loop_header
      %s24 = sphi 0, %s28
      %p25 = scmp.ge.s32.totalorder %s24, 4
      %s34 = sphi 0, %s36
      %s37 = sphi 0, %s34
      %s38 = sphi 0, %s37
      %s54 = sphi 0, %s38
      %s58 = sphi 0, %s58
      %s60 = sphi 0, %s58
      %s61 = sphi 0, %s60
      %s75 = sphi 0, %s61
      %s79 = sphi 0, %s79
      %s81 = sphi 0, %s79
      %s82 = sphi 0, %s81
      %s96 = sphi 0, %s82
      %s100 = sphi 0, %s100
      %s102 = sphi 0, %s100
      %s103 = sphi 0, %s102
      %s117 = sphi 0, %s103
      %s121 = sphi 0, %s121
      %s123 = sphi 0, %s121
      %s124 = sphi 0, %s123
      %s138 = sphi 0, %s124
      %s142 = sphi 0, %s142
      %s144 = sphi 0, %s142
      %s145 = sphi 0, %s144
      %s159 = sphi 0, %s145
      %s163 = sphi 0, %s163
      %s165 = sphi 0, %s163
      %s166 = sphi 0, %s165
      %s180 = sphi 0, %s166
      %s184 = sphi 0, %s184
      %s186 = sphi 0, %s184
      %s187 = sphi 0, %s186
      %s201 = sphi 0, %s187
      %s205 = sphi 0, %s205
      %s207 = sphi 0, %s205
      %s208 = sphi 0, %s207
      %s222 = sphi 0, %s208
      %s228 = sphi 0, %s230
      %s231 = sphi 0, %s228
      %s232 = sphi 0, %s231
      %s248 = sphi 0, %s232
    $region4: #{ae_forward.1} parent=1 // loop_header_branch
      %27 = sbr.rel (%p25) target = $region8
    $region5: #{ae_forward.1} parent=1 // loop_body
      %s29 = ssub.s32 %s24, 1
      %s30 = ssub.s32 %s24, 2
      %s31 = sadd.s32 %s24, 1
      %s32 = ssub.s32 %s24, %s31
      %p33 = scmp.eq.s32.totalorder %s32, 0
      %s35 = sadd.s32 %s34, 1
      %s36 = scalar_select %p33, %s34, %s35
      %p39 = pneg %p33
      %p40 = scmp.eq.s32.totalorder %s24, 1
      %p41 = por %p39, %p40
      %p42 = scmp.ne.s32.totalorder %s34, %s37
      %p43 = scmp.eq.s32.totalorder %s24, 0
      %p44 = por %p42, %p43
      %p45 = scmp.ne.s32.totalorder %s34, %s37
      %p46 = scmp.eq.s32.totalorder %s29, 1
      %p47 = por %p45, %p46
      %p48 = scmp.ne.s32.totalorder %s37, %s38
      %p49 = scmp.eq.s32.totalorder %s29, 0
      %p50 = por %p48, %p49
      %p51 = scmp.ne.s32.totalorder %s37, %s38
      %p52 = scmp.eq.s32.totalorder %s30, 1
      %p53 = por %p51, %p52
      %p55 = scmp.ne.s32.totalorder %s38, %s54
      %p56 = scmp.eq.s32.totalorder %s30, 0
      %p57 = por %p55, %p56
      %s59 = sadd.s32 %s58, 1
      %p62 = scmp.eq.s32.totalorder %s24, 1
      %p63 = scmp.ne.s32.totalorder %s58, %s60
      %p64 = scmp.eq.s32.totalorder %s24, 0
      %p65 = por %p63, %p64
      %p66 = scmp.ne.s32.totalorder %s58, %s60
      %p67 = scmp.eq.s32.totalorder %s29, 1
      %p68 = por %p66, %p67
      %p69 = scmp.ne.s32.totalorder %s60, %s61
      %p70 = scmp.eq.s32.totalorder %s29, 0
      %p71 = por %p69, %p70
      %p72 = scmp.ne.s32.totalorder %s60, %s61
      %p73 = scmp.eq.s32.totalorder %s30, 1
      %p74 = por %p72, %p73
      %p76 = scmp.ne.s32.totalorder %s61, %s75
      %p77 = scmp.eq.s32.totalorder %s30, 0
      %p78 = por %p76, %p77
      %s80 = sadd.s32 %s79, 1
      %p83 = scmp.eq.s32.totalorder %s24, 1
      %p84 = scmp.ne.s32.totalorder %s79, %s81
      %p85 = scmp.eq.s32.totalorder %s24, 0
      %p86 = por %p84, %p85
      %p87 = scmp.ne.s32.totalorder %s79, %s81
      %p88 = scmp.eq.s32.totalorder %s29, 1
      %p89 = por %p87, %p88
      %p90 = scmp.ne.s32.totalorder %s81, %s82
      %p91 = scmp.eq.s32.totalorder %s29, 0
      %p92 = por %p90, %p91
      %p93 = scmp.ne.s32.totalorder %s81, %s82
      %p94 = scmp.eq.s32.totalorder %s30, 1
      %p95 = por %p93, %p94
      %p97 = scmp.ne.s32.totalorder %s82, %s96
      %p98 = scmp.eq.s32.totalorder %s30, 0
      %p99 = por %p97, %p98
      %s101 = sadd.s32 %s100, 1
      %p104 = scmp.eq.s32.totalorder %s24, 1
      %p105 = scmp.ne.s32.totalorder %s100, %s102
      %p106 = scmp.eq.s32.totalorder %s24, 0
      %p107 = por %p105, %p106
      %p108 = scmp.ne.s32.totalorder %s100, %s102
      %p109 = scmp.eq.s32.totalorder %s29, 1
      %p110 = por %p108, %p109
      %p111 = scmp.ne.s32.totalorder %s102, %s103
      %p112 = scmp.eq.s32.totalorder %s29, 0
      %p113 = por %p111, %p112
      %p114 = scmp.ne.s32.totalorder %s102, %s103
      %p115 = scmp.eq.s32.totalorder %s30, 1
      %p116 = por %p114, %p115
      %p118 = scmp.ne.s32.totalorder %s103, %s117
      %p119 = scmp.eq.s32.totalorder %s30, 0
      %p120 = por %p118, %p119
      %s122 = sadd.s32 %s121, 1
      %p125 = scmp.eq.s32.totalorder %s24, 1
      %p126 = scmp.ne.s32.totalorder %s121, %s123
      %p127 = scmp.eq.s32.totalorder %s24, 0
      %p128 = por %p126, %p127
      %p129 = scmp.ne.s32.totalorder %s121, %s123
      %p130 = scmp.eq.s32.totalorder %s29, 1
      %p131 = por %p129, %p130
      %p132 = scmp.ne.s32.totalorder %s123, %s124
      %p133 = scmp.eq.s32.totalorder %s29, 0
      %p134 = por %p132, %p133
      %p135 = scmp.ne.s32.totalorder %s123, %s124
      %p136 = scmp.eq.s32.totalorder %s30, 1
      %p137 = por %p135, %p136
      %p139 = scmp.ne.s32.totalorder %s124, %s138
      %p140 = scmp.eq.s32.totalorder %s30, 0
      %p141 = por %p139, %p140
      %s143 = sadd.s32 %s142, 1
      %p146 = scmp.eq.s32.totalorder %s24, 1
      %p147 = scmp.ne.s32.totalorder %s142, %s144
      %p148 = scmp.eq.s32.totalorder %s24, 0
      %p149 = por %p147, %p148
      %p150 = scmp.ne.s32.totalorder %s142, %s144
      %p151 = scmp.eq.s32.totalorder %s29, 1
      %p152 = por %p150, %p151
      %p153 = scmp.ne.s32.totalorder %s144, %s145
      %p154 = scmp.eq.s32.totalorder %s29, 0
      %p155 = por %p153, %p154
      %p156 = scmp.ne.s32.totalorder %s144, %s145
      %p157 = scmp.eq.s32.totalorder %s30, 1
      %p158 = por %p156, %p157
      %p160 = scmp.ne.s32.totalorder %s145, %s159
      %p161 = scmp.eq.s32.totalorder %s30, 0
      %p162 = por %p160, %p161
      %s164 = sadd.s32 %s163, 1
      %p167 = scmp.eq.s32.totalorder %s24, 1
      %p168 = scmp.ne.s32.totalorder %s163, %s165
      %p169 = scmp.eq.s32.totalorder %s24, 0
      %p170 = por %p168, %p169
      %p171 = scmp.ne.s32.totalorder %s163, %s165
      %p172 = scmp.eq.s32.totalorder %s29, 1
      %p173 = por %p171, %p172
      %p174 = scmp.ne.s32.totalorder %s165, %s166
      %p175 = scmp.eq.s32.totalorder %s29, 0
      %p176 = por %p174, %p175
      %p177 = scmp.ne.s32.totalorder %s165, %s166
      %p178 = scmp.eq.s32.totalorder %s30, 1
      %p179 = por %p177, %p178
      %p181 = scmp.ne.s32.totalorder %s166, %s180
      %p182 = scmp.eq.s32.totalorder %s30, 0
      %p183 = por %p181, %p182
      %s185 = sadd.s32 %s184, 1
      %p188 = scmp.eq.s32.totalorder %s24, 1
      %p189 = scmp.ne.s32.totalorder %s184, %s186
      %p190 = scmp.eq.s32.totalorder %s24, 0
      %p191 = por %p189, %p190
      %p192 = scmp.ne.s32.totalorder %s184, %s186
      %p193 = scmp.eq.s32.totalorder %s29, 1
      %p194 = por %p192, %p193
      %p195 = scmp.ne.s32.totalorder %s186, %s187
      %p196 = scmp.eq.s32.totalorder %s29, 0
      %p197 = por %p195, %p196
      %p198 = scmp.ne.s32.totalorder %s186, %s187
      %p199 = scmp.eq.s32.totalorder %s30, 1
      %p200 = por %p198, %p199
      %p202 = scmp.ne.s32.totalorder %s187, %s201
      %p203 = scmp.eq.s32.totalorder %s30, 0
      %p204 = por %p202, %p203
      %s206 = sadd.s32 %s205, 1
      %p209 = scmp.eq.s32.totalorder %s24, 1
      %p210 = scmp.ne.s32.totalorder %s205, %s207
      %p211 = scmp.eq.s32.totalorder %s24, 0
      %p212 = por %p210, %p211
      %p213 = scmp.ne.s32.totalorder %s205, %s207
      %p214 = scmp.eq.s32.totalorder %s29, 1
      %p215 = por %p213, %p214
      %p216 = scmp.ne.s32.totalorder %s207, %s208
      %p217 = scmp.eq.s32.totalorder %s29, 0
      %p218 = por %p216, %p217
      %p219 = scmp.ne.s32.totalorder %s207, %s208
      %p220 = scmp.eq.s32.totalorder %s30, 1
      %p221 = por %p219, %p220
      %p223 = scmp.ne.s32.totalorder %s208, %s222
      %p224 = scmp.eq.s32.totalorder %s30, 0
      %p225 = por %p223, %p224
      %s226 = ssub.s32 %s24, %s31
      %p227 = scmp.eq.s32.totalorder %s226, 0
      %s229 = sadd.s32 %s228, 1
      %s230 = scalar_select %p227, %s228, %s229
      %p233 = pneg %p227
      %p234 = scmp.eq.s32.totalorder %s24, 1
      %p235 = por %p233, %p234
      %p236 = scmp.ne.s32.totalorder %s228, %s231
      %p237 = scmp.eq.s32.totalorder %s24, 0
      %p238 = por %p236, %p237
      %p239 = scmp.ne.s32.totalorder %s228, %s231
      %p240 = scmp.eq.s32.totalorder %s29, 1
      %p241 = por %p239, %p240
      %p242 = scmp.ne.s32.totalorder %s231, %s232
      %p243 = scmp.eq.s32.totalorder %s29, 0
      %p244 = por %p242, %p243
      %p245 = scmp.ne.s32.totalorder %s231, %s232
      %p246 = scmp.eq.s32.totalorder %s30, 1
      %p247 = por %p245, %p246
      %p249 = scmp.ne.s32.totalorder %s232, %s248
      %p250 = scmp.eq.s32.totalorder %s30, 0
      %p251 = por %p249, %p250
      %p252 = scmp.le.s32.totalorder 1, %s24
      %p253 = scmp.lt.s32.totalorder %s24, 3
      %p254 = pnand %p252, %p253
      %p255 = pneg %p254
      // Predicated region
      $region9: #{ae_forward.1} parent=5 // pred_check
        _
      $region10: #{ae_forward.1} parent=5 // pred_check_branch
        %257 = sbr.rel (%p254) target = $region12
      $region11: #{ae_forward.1} parent=5 // pred_region
        %s258 = ssub.s32 %s24, 1
        // Predicated region
        $region13: #{ae_forward.1} parent=11 // pred_check
          %p259 = pneg %p71
        $region14: #{ae_forward.1} parent=11 // pred_check_branch
          %261 = sbr.rel (%p259) target = $region16
        $region15: #{ae_forward.1} parent=11 // pred_region
          %263 = vsyncadd [#allocation6], 0
          %s264 = sshll.u32 %s1, 4
          %s265 = int_to_ptr.hbm [resolvable:$true] %s264
          %s266 = sshll.u32 [#allocation5], 4
          %s267 = int_to_ptr.vmem [resolvable:$true] %s266
          %272 = dma.hbm_to_vmem [thread:$0]  %s265, 2048, %s267, [#allocation6], 64, 64, 4
        $region16: #{ae_forward.1} parent=11 // pred_fallthru
          _
        // Predicated region
        $region17: #{ae_forward.1} parent=11 // pred_check
          %p273 = pneg %p92
        $region18: #{ae_forward.1} parent=11 // pred_check_branch
          %275 = sbr.rel (%p273) target = $region20
        $region19: #{ae_forward.1} parent=11 // pred_region
          %277 = vsyncadd [#allocation6], 0
          %s279 = sshll.u32 %s2, 4
          %s280 = int_to_ptr.hbm [resolvable:$true] %s279
          %s281 = sshll.u32 [#allocation7], 4
          %s282 = int_to_ptr.vmem [resolvable:$true] %s281
          %284 = dma.hbm_to_vmem [thread:$0]  %s280, 16, %s282, [#allocation6]
        $region20: #{ae_forward.1} parent=11 // pred_fallthru
          _
        // Predicated region
        $region21: #{ae_forward.1} parent=11 // pred_check
          %p285 = pneg %p113
        $region22: #{ae_forward.1} parent=11 // pred_check_branch
          %287 = sbr.rel (%p285) target = $region24
        $region23: #{ae_forward.1} parent=11 // pred_region
          %289 = vsyncadd [#allocation9], 0
          %s290 = sshll.u32 %s3, 4
          %s291 = int_to_ptr.hbm [resolvable:$true] %s290
          %s292 = sshll.u32 [#allocation8], 4
          %s293 = int_to_ptr.vmem [resolvable:$true] %s292
          %298 = dma.hbm_to_vmem [thread:$0]  %s291, 1024, %s293, [#allocation9], 64, 64, 4
        $region24: #{ae_forward.1} parent=11 // pred_fallthru
          _
        // Predicated region
        $region25: #{ae_forward.1} parent=11 // pred_check
          %p299 = pneg %p134
        $region26: #{ae_forward.1} parent=11 // pred_check_branch
          %301 = sbr.rel (%p299) target = $region28
        $region27: #{ae_forward.1} parent=11 // pred_region
          _
        $region28: #{ae_forward.1} parent=11 // pred_fallthru
          _
        // Predicated region
        $region29: #{ae_forward.1} parent=11 // pred_check
          %p302 = pneg %p155
        $region30: #{ae_forward.1} parent=11 // pred_check_branch
          %304 = sbr.rel (%p302) target = $region32
        $region31: #{ae_forward.1} parent=11 // pred_region
          %306 = vsyncadd [#allocation9], 0
          %s307 = sshll.u32 %s5, 4
          %s308 = int_to_ptr.hbm [resolvable:$true] %s307
          %s309 = sshll.u32 [#allocation10], 4
          %s310 = int_to_ptr.vmem [resolvable:$true] %s309
          %315 = dma.hbm_to_vmem [thread:$0]  %s308, 1024, %s310, [#allocation9], 64, 64, 4
        $region32: #{ae_forward.1} parent=11 // pred_fallthru
          _
        // Predicated region
        $region33: #{ae_forward.1} parent=11 // pred_check
          %p316 = pneg %p176
        $region34: #{ae_forward.1} parent=11 // pred_check_branch
          %318 = sbr.rel (%p316) target = $region36
        $region35: #{ae_forward.1} parent=11 // pred_region
          %320 = vsyncadd [#allocation12], 0
          %s322 = sshll.u32 %s6, 4
          %s323 = int_to_ptr.hbm [resolvable:$true] %s322
          %s324 = sshll.u32 [#allocation11], 4
          %s325 = int_to_ptr.vmem [resolvable:$true] %s324
          %327 = dma.hbm_to_vmem [thread:$0]  %s323, 16, %s325, [#allocation12]
        $region36: #{ae_forward.1} parent=11 // pred_fallthru
          _
        // Predicated region
        $region37: #{ae_forward.1} parent=11 // pred_check
          %p328 = pneg %p197
        $region38: #{ae_forward.1} parent=11 // pred_check_branch
          %330 = sbr.rel (%p328) target = $region40
        $region39: #{ae_forward.1} parent=11 // pred_region
          %332 = vsyncadd [#allocation12], 0
          %s333 = sshll.u32 %s7, 4
          %s334 = int_to_ptr.hbm [resolvable:$true] %s333
          %s335 = sshll.u32 [#allocation13], 4
          %s336 = int_to_ptr.vmem [resolvable:$true] %s335
          %341 = dma.hbm_to_vmem [thread:$0]  %s334, 2048, %s336, [#allocation12], 128, 128, 8
        $region40: #{ae_forward.1} parent=11 // pred_fallthru
          _
        // Predicated region
        $region41: #{ae_forward.1} parent=11 // pred_check
          %p342 = pneg %p218
        $region42: #{ae_forward.1} parent=11 // pred_check_branch
          %344 = sbr.rel (%p342) target = $region44
        $region43: #{ae_forward.1} parent=11 // pred_region
          _
        $region44: #{ae_forward.1} parent=11 // pred_fallthru
          _
      $region12: #{ae_forward.1} parent=5 // pred_fallthru
        _
      %p345 = scmp.lt.s32.totalorder %s24, 2
      // Predicated region
      $region45: #{ae_forward.1} parent=5 // pred_check
        %p346 = pneg %p345
      $region46: #{ae_forward.1} parent=5 // pred_check_branch
        %348 = sbr.rel (%p346) target = $region48
      $region47: #{ae_forward.1} parent=5 // pred_region
        // Predicated region
        $region49: #{ae_forward.1} parent=47 // pred_check
          %p349 = pneg %p44
        $region50: #{ae_forward.1} parent=47 // pred_check_branch
          %351 = sbr.rel (%p349) target = $region52
        $region51: #{ae_forward.1} parent=47 // pred_region
          %s352 = sand.u32 %s34, 1
          %s353 = scalar_lea.sflag [#allocation3], %s352
          %s354 = sand.u32 %s34, 1
          %s355 = smul.addr %s354, 32
          %s356 = scalar_lea.vmem [#allocation2], %s355
          %s357 = smul.u32 2, %s24
          %359 = vsyncadd %s353, 0
          %s360 = smul.addr %s357, 2
          %s361 = smul.addr %s360, 8
          %s362 = scalar_lea.hbm %s0, %s361
          %s363 = sshll.u32 %s362, 4
          %s364 = int_to_ptr.hbm [resolvable:$true] %s363
          %s365 = sshll.u32 %s356, 4
          %s366 = int_to_ptr.vmem [resolvable:$true] %s365
          %371 = dma.hbm_to_vmem [thread:$0]  %s364, 512, %s366, %s353, 256, 256, 16
        $region52: #{ae_forward.1} parent=47 // pred_fallthru
          _
      $region48: #{ae_forward.1} parent=5 // pred_fallthru
        _
      %p372 = scmp.le.s32.totalorder 1, %s24
      %p373 = scmp.lt.s32.totalorder %s24, 3
      %p374 = pnand %p372, %p373
      %p375 = pneg %p374
      // Predicated region
      $region53: #{ae_forward.1} parent=5 // pred_check
        _
      $region54: #{ae_forward.1} parent=5 // pred_check_branch
        %377 = sbr.rel (%p374) target = $region56
      $region55: #{ae_forward.1} parent=5 // pred_region
        %s378 = ssub.s32 %s24, 1
        %s379 = sand.u32 %s37, 1
        %s380 = scalar_lea.sflag [#allocation3], %s379
        %s381 = sand.u32 %s37, 1
        %s382 = smul.addr %s381, 32
        %s383 = scalar_lea.vmem [#allocation2], %s382
        // Predicated region
        $region57: #{ae_forward.1} parent=55 // pred_check
          %p384 = pneg %p50
        $region58: #{ae_forward.1} parent=55 // pred_check_branch
          %386 = sbr.rel (%p384) target = $region60
        $region59: #{ae_forward.1} parent=55 // pred_region
          %388 = dma.done %s380, 512
        $region60: #{ae_forward.1} parent=55 // pred_fallthru
          _
        // Predicated region
        $region61: #{ae_forward.1} parent=55 // pred_check
          %p389 = pneg %p71
        $region62: #{ae_forward.1} parent=55 // pred_check_branch
          %391 = sbr.rel (%p389) target = $region64
        $region63: #{ae_forward.1} parent=55 // pred_region
          %393 = dma.done [#allocation6], 2048
        $region64: #{ae_forward.1} parent=55 // pred_fallthru
          _
        // Predicated region
        $region65: #{ae_forward.1} parent=55 // pred_check
          %p394 = pneg %p92
        $region66: #{ae_forward.1} parent=55 // pred_check_branch
          %396 = sbr.rel (%p394) target = $region68
        $region67: #{ae_forward.1} parent=55 // pred_region
          %398 = dma.done [#allocation6], 16
        $region68: #{ae_forward.1} parent=55 // pred_fallthru
          _
        // Predicated region
        $region69: #{ae_forward.1} parent=55 // pred_check
          %p399 = pneg %p113
        $region70: #{ae_forward.1} parent=55 // pred_check_branch
          %401 = sbr.rel (%p399) target = $region72
        $region71: #{ae_forward.1} parent=55 // pred_region
          %403 = dma.done [#allocation9], 1024
        $region72: #{ae_forward.1} parent=55 // pred_fallthru
          _
        // Predicated region
        $region73: #{ae_forward.1} parent=55 // pred_check
          %p404 = pneg %p155
        $region74: #{ae_forward.1} parent=55 // pred_check_branch
          %406 = sbr.rel (%p404) target = $region76
        $region75: #{ae_forward.1} parent=55 // pred_region
          %408 = dma.done [#allocation9], 1024
        $region76: #{ae_forward.1} parent=55 // pred_fallthru
          _
        // Predicated region
        $region77: #{ae_forward.1} parent=55 // pred_check
          %p409 = pneg %p176
        $region78: #{ae_forward.1} parent=55 // pred_check_branch
          %411 = sbr.rel (%p409) target = $region80
        $region79: #{ae_forward.1} parent=55 // pred_region
          %413 = dma.done [#allocation12], 16
        $region80: #{ae_forward.1} parent=55 // pred_fallthru
          _
        // Predicated region
        $region81: #{ae_forward.1} parent=55 // pred_check
          %p414 = pneg %p197
        $region82: #{ae_forward.1} parent=55 // pred_check_branch
          %416 = sbr.rel (%p414) target = $region84
        $region83: #{ae_forward.1} parent=55 // pred_region
          %418 = dma.done [#allocation12], 2048
        $region84: #{ae_forward.1} parent=55 // pred_fallthru
          _
        %s419 = sand.u32 %s37, 1
        %s420 = scalar_lea.sflag [#allocation3], %s419
        %s421 = sand.u32 %s37, 1
        %s422 = smul.addr %s421, 32
        %s423 = scalar_lea.vmem [#allocation2], %s422
        %p424 = pneg %p50
        %p425 = pneg %p47
        %p426 = pneg %p71
        %p427 = pneg %p68
        %p428 = pneg %p92
        %p429 = pneg %p89
        %p430 = pneg %p113
        %p431 = pneg %p110
        %p432 = pneg %p134
        %p433 = pneg %p131
        %p434 = pneg %p155
        %p435 = pneg %p152
        %p436 = pneg %p176
        %p437 = pneg %p173
        %p438 = pneg %p197
        %p439 = pneg %p194
        %p440 = pneg %p218
        %p441 = pneg %p215
        %p442 = pneg %p244
        %p443 = pneg %p241
        %s444 = sand.u32 %s231, 1
        %s445 = scalar_lea.sflag [#allocation4], %s444
        %s446 = sand.u32 %s231, 1
        %s447 = smul.addr %s446, 32
        %s448 = scalar_lea.vmem [#allocation14], %s447
        %s449 = smul.u32 2, %s29
        %s450 = smul.u32 2, %s29
        %v451 = vld [vmem:[%s383] sm:$0xff]
        %v452 = vld [vmem:[%s383 + $0x8] sm:$0xff]
        %v453 = vld [vmem:[%s383 + $0x10] sm:$0xff]
        %v454 = vld [vmem:[%s383 + $0x18] sm:$0xff]
        %v455 = vpack.c.bf16 %v453, %v451
        %v456 = vpack.c.bf16 %v454, %v452
        %v457 = vld [vmem:[#allocation5] sm:$0xf]
        %v458 = vld [vmem:[#allocation5 + $0x4] sm:$0xf]
        %v459 = vld [vmem:[#allocation5 + $0x8] sm:$0xf]
        %v460 = vld [vmem:[#allocation5 + $0xc] sm:$0xf]
        %v461 = vld [vmem:[#allocation5 + $0x10] sm:$0xf]
        %v462 = vld [vmem:[#allocation5 + $0x14] sm:$0xf]
        %v463 = vld [vmem:[#allocation5 + $0x18] sm:$0xf]
        %v464 = vld [vmem:[#allocation5 + $0x1c] sm:$0xf]
        %v465 = vld [vmem:[#allocation5 + $0x20] sm:$0xf]
        %v466 = vld [vmem:[#allocation5 + $0x24] sm:$0xf]
        %v467 = vld [vmem:[#allocation5 + $0x28] sm:$0xf]
        %v468 = vld [vmem:[#allocation5 + $0x2c] sm:$0xf]
        %v469 = vld [vmem:[#allocation5 + $0x30] sm:$0xf]
        %v470 = vld [vmem:[#allocation5 + $0x34] sm:$0xf]
        %v471 = vld [vmem:[#allocation5 + $0x38] sm:$0xf]
        %v472 = vld [vmem:[#allocation5 + $0x3c] sm:$0xf]
        %v473 = vld [vmem:[#allocation5 + $0x40] sm:$0xf]
        %v474 = vld [vmem:[#allocation5 + $0x44] sm:$0xf]
        %v475 = vld [vmem:[#allocation5 + $0x48] sm:$0xf]
        %v476 = vld [vmem:[#allocation5 + $0x4c] sm:$0xf]
        %v477 = vld [vmem:[#allocation5 + $0x50] sm:$0xf]
        %v478 = vld [vmem:[#allocation5 + $0x54] sm:$0xf]
        %v479 = vld [vmem:[#allocation5 + $0x58] sm:$0xf]
        %v480 = vld [vmem:[#allocation5 + $0x5c] sm:$0xf]
        %v481 = vld [vmem:[#allocation5 + $0x60] sm:$0xf]
        %v482 = vld [vmem:[#allocation5 + $0x64] sm:$0xf]
        %v483 = vld [vmem:[#allocation5 + $0x68] sm:$0xf]
        %v484 = vld [vmem:[#allocation5 + $0x6c] sm:$0xf]
        %v485 = vld [vmem:[#allocation5 + $0x70] sm:$0xf]
        %v486 = vld [vmem:[#allocation5 + $0x74] sm:$0xf]
        %v487 = vld [vmem:[#allocation5 + $0x78] sm:$0xf]
        %v488 = vld [vmem:[#allocation5 + $0x7c] sm:$0xf]
        %v489 = vld [vmem:[#allocation7] sm:$0x1]
        %v491 = vperm.slane %v489, 0
        %v525 = vunpack.c.l.b16 %v457
        %v526 = vunpack.c.l.b16 %v458
        %v527 = vunpack.c.l.b16 %v459
        %v528 = vunpack.c.l.b16 %v460
        %v529 = vunpack.c.l.b16 %v461
        %v530 = vunpack.c.l.b16 %v462
        %v531 = vunpack.c.l.b16 %v463
        %v532 = vunpack.c.l.b16 %v464
        %v533 = vunpack.c.l.b16 %v465
        %v534 = vunpack.c.l.b16 %v466
        %v535 = vunpack.c.l.b16 %v467
        %v536 = vunpack.c.l.b16 %v468
        %v537 = vunpack.c.l.b16 %v469
        %v538 = vunpack.c.l.b16 %v470
        %v539 = vunpack.c.l.b16 %v471
        %v540 = vunpack.c.l.b16 %v472
        %v541 = vunpack.c.l.b16 %v473
        %v542 = vunpack.c.l.b16 %v474
        %v543 = vunpack.c.l.b16 %v475
        %v544 = vunpack.c.l.b16 %v476
        %v545 = vunpack.c.l.b16 %v477
        %v546 = vunpack.c.l.b16 %v478
        %v547 = vunpack.c.l.b16 %v479
        %v548 = vunpack.c.l.b16 %v480
        %v549 = vunpack.c.l.b16 %v481
        %v550 = vunpack.c.l.b16 %v482
        %v551 = vunpack.c.l.b16 %v483
        %v552 = vunpack.c.l.b16 %v484
        %v553 = vunpack.c.l.b16 %v485
        %v554 = vunpack.c.l.b16 %v486
        %v555 = vunpack.c.l.b16 %v487
        %v556 = vunpack.c.l.b16 %v488
        %v557 = vpack.c.b16 %v526, %v525
        %v558 = vpack.c.b16 %v528, %v527
        %v559 = vpack.c.b16 %v530, %v529
        %v560 = vpack.c.b16 %v532, %v531
        %v561 = vpack.c.b16 %v534, %v533
        %v562 = vpack.c.b16 %v536, %v535
        %v563 = vpack.c.b16 %v538, %v537
        %v564 = vpack.c.b16 %v540, %v539
        %v565 = vpack.c.b16 %v542, %v541
        %v566 = vpack.c.b16 %v544, %v543
        %v567 = vpack.c.b16 %v546, %v545
        %v568 = vpack.c.b16 %v548, %v547
        %v569 = vpack.c.b16 %v550, %v549
        %v570 = vpack.c.b16 %v552, %v551
        %v571 = vpack.c.b16 %v554, %v553
        %v572 = vpack.c.b16 %v556, %v555
        %589 = vmatpush.bf16.msra.mxu0 %v564
        %590 = vmatpush.bf16.msra.mxu0 %v563
        %591 = vmatpush.bf16.msra.mxu0 %v562
        %592 = vmatpush.bf16.msra.mxu0 %v561
        %593 = vmatpush.bf16.msra.mxu0 %v560
        %594 = vmatpush.bf16.msra.mxu0 %v559
        %595 = vmatpush.bf16.msra.mxu0 %v558
        %596 = vmatpush.bf16.msra.mxu0 %v557
        %597 = vmatmul.bf16.gmra.mxu0 %v455
        %v598 = vpop.f32.mrf.mxu0
        %v599 = vadd.f32 %v491, %v598
        %v600 = vpop.f32.mrf.mxu0
        %v601 = vadd.f32 %v491, %v600
        %602 = vdwg.mxu0
        %603 = vmatpush.bf16.msra.mxu0 %v572
        %604 = vmatpush.bf16.msra.mxu0 %v571
        %605 = vmatpush.bf16.msra.mxu0 %v570
        %606 = vmatpush.bf16.msra.mxu0 %v569
        %607 = vmatpush.bf16.msra.mxu0 %v568
        %608 = vmatpush.bf16.msra.mxu0 %v567
        %609 = vmatpush.bf16.msra.mxu0 %v566
        %610 = vmatpush.bf16.msra.mxu0 %v565
        %611 = vmatmul.bf16.gmra.mxu0 %v456
        %v612 = vpop.f32.mrf.mxu0
        %v613 = vadd.f32 %v599, %v612
        %v614 = vpop.f32.mrf.mxu0
        %v615 = vadd.f32 %v601, %v614
        %616 = vdwg.mxu0
        %v617 = vmax.f32 %v613, 0.0
        %v618 = vmax.f32 %v615, 0.0
        %v619 = vpack.c.bf16 %v618, %v617
        %v620 = vld [vmem:[#allocation8] sm:$0xf]
        %v621 = vld [vmem:[#allocation8 + $0x4] sm:$0xf]
        %v622 = vld [vmem:[#allocation8 + $0x8] sm:$0xf]
        %v623 = vld [vmem:[#allocation8 + $0xc] sm:$0xf]
        %v624 = vld [vmem:[#allocation8 + $0x10] sm:$0xf]
        %v625 = vld [vmem:[#allocation8 + $0x14] sm:$0xf]
        %v626 = vld [vmem:[#allocation8 + $0x18] sm:$0xf]
        %v627 = vld [vmem:[#allocation8 + $0x1c] sm:$0xf]
        %v628 = vld [vmem:[#allocation8 + $0x20] sm:$0xf]
        %v629 = vld [vmem:[#allocation8 + $0x24] sm:$0xf]
        %v630 = vld [vmem:[#allocation8 + $0x28] sm:$0xf]
        %v631 = vld [vmem:[#allocation8 + $0x2c] sm:$0xf]
        %v632 = vld [vmem:[#allocation8 + $0x30] sm:$0xf]
        %v633 = vld [vmem:[#allocation8 + $0x34] sm:$0xf]
        %v634 = vld [vmem:[#allocation8 + $0x38] sm:$0xf]
        %v635 = vld [vmem:[#allocation8 + $0x3c] sm:$0xf]
        %v636 = vld [vmem:[%s4] sm:$0x1]
        %v638 = vperm.slane %v636, 0
        %v656 = vunpack.c.l.b16 %v620
        %v657 = vunpack.c.l.b16 %v621
        %v658 = vunpack.c.l.b16 %v622
        %v659 = vunpack.c.l.b16 %v623
        %v660 = vunpack.c.l.b16 %v624
        %v661 = vunpack.c.l.b16 %v625
        %v662 = vunpack.c.l.b16 %v626
        %v663 = vunpack.c.l.b16 %v627
        %v664 = vunpack.c.l.b16 %v628
        %v665 = vunpack.c.l.b16 %v629
        %v666 = vunpack.c.l.b16 %v630
        %v667 = vunpack.c.l.b16 %v631
        %v668 = vunpack.c.l.b16 %v632
        %v669 = vunpack.c.l.b16 %v633
        %v670 = vunpack.c.l.b16 %v634
        %v671 = vunpack.c.l.b16 %v635
        %v672 = vpack.c.b16 %v657, %v656
        %v673 = vpack.c.b16 %v659, %v658
        %v674 = vpack.c.b16 %v661, %v660
        %v675 = vpack.c.b16 %v663, %v662
        %v676 = vpack.c.b16 %v665, %v664
        %v677 = vpack.c.b16 %v667, %v666
        %v678 = vpack.c.b16 %v669, %v668
        %v679 = vpack.c.b16 %v671, %v670
        %688 = vmatpush.bf16.msra.mxu0 %v679
        %689 = vmatpush.bf16.msra.mxu0 %v678
        %690 = vmatpush.bf16.msra.mxu0 %v677
        %691 = vmatpush.bf16.msra.mxu0 %v676
        %692 = vmatpush.bf16.msra.mxu0 %v675
        %693 = vmatpush.bf16.msra.mxu0 %v674
        %694 = vmatpush.bf16.msra.mxu0 %v673
        %695 = vmatpush.bf16.msra.mxu0 %v672
        %696 = vmatmul.bf16.gmra.mxu0 %v619
        %v697 = vpop.f32.mrf.mxu0
        %v698 = vadd.f32 %v638, %v697
        %v699 = vpop.f32.mrf.mxu0
        %v700 = vadd.f32 %v638, %v699
        %701 = vdwg.mxu0
        %v702 = vmax.f32 %v698, 0.0
        %v703 = vmax.f32 %v700, 0.0
        %v704 = vpack.c.bf16 %v703, %v702
        %v705 = vld [vmem:[#allocation10] sm:$0xf]
        %v706 = vld [vmem:[#allocation10 + $0x4] sm:$0xf]
        %v707 = vld [vmem:[#allocation10 + $0x8] sm:$0xf]
        %v708 = vld [vmem:[#allocation10 + $0xc] sm:$0xf]
        %v709 = vld [vmem:[#allocation10 + $0x10] sm:$0xf]
        %v710 = vld [vmem:[#allocation10 + $0x14] sm:$0xf]
        %v711 = vld [vmem:[#allocation10 + $0x18] sm:$0xf]
        %v712 = vld [vmem:[#allocation10 + $0x1c] sm:$0xf]
        %v713 = vld [vmem:[#allocation10 + $0x20] sm:$0xf]
        %v714 = vld [vmem:[#allocation10 + $0x24] sm:$0xf]
        %v715 = vld [vmem:[#allocation10 + $0x28] sm:$0xf]
        %v716 = vld [vmem:[#allocation10 + $0x2c] sm:$0xf]
        %v717 = vld [vmem:[#allocation10 + $0x30] sm:$0xf]
        %v718 = vld [vmem:[#allocation10 + $0x34] sm:$0xf]
        %v719 = vld [vmem:[#allocation10 + $0x38] sm:$0xf]
        %v720 = vld [vmem:[#allocation10 + $0x3c] sm:$0xf]
        %v721 = vld [vmem:[#allocation11] sm:$0x1]
        %v723 = vperm.slane %v721, 0
        %v741 = vunpack.c.l.b16 %v705
        %v742 = vunpack.c.l.b16 %v706
        %v743 = vunpack.c.l.b16 %v707
        %v744 = vunpack.c.l.b16 %v708
        %v745 = vunpack.c.l.b16 %v709
        %v746 = vunpack.c.l.b16 %v710
        %v747 = vunpack.c.l.b16 %v711
        %v748 = vunpack.c.l.b16 %v712
        %v749 = vunpack.c.l.b16 %v713
        %v750 = vunpack.c.l.b16 %v714
        %v751 = vunpack.c.l.b16 %v715
        %v752 = vunpack.c.l.b16 %v716
        %v753 = vunpack.c.l.b16 %v717
        %v754 = vunpack.c.l.b16 %v718
        %v755 = vunpack.c.l.b16 %v719
        %v756 = vunpack.c.l.b16 %v720
        %v757 = vpack.c.b16 %v742, %v741
        %v758 = vpack.c.b16 %v744, %v743
        %v759 = vpack.c.b16 %v746, %v745
        %v760 = vpack.c.b16 %v748, %v747
        %v761 = vpack.c.b16 %v750, %v749
        %v762 = vpack.c.b16 %v752, %v751
        %v763 = vpack.c.b16 %v754, %v753
        %v764 = vpack.c.b16 %v756, %v755
        %773 = vmatpush.bf16.msra.mxu0 %v764
        %774 = vmatpush.bf16.msra.mxu0 %v763
        %775 = vmatpush.bf16.msra.mxu0 %v762
        %776 = vmatpush.bf16.msra.mxu0 %v761
        %777 = vmatpush.bf16.msra.mxu0 %v760
        %778 = vmatpush.bf16.msra.mxu0 %v759
        %779 = vmatpush.bf16.msra.mxu0 %v758
        %780 = vmatpush.bf16.msra.mxu0 %v757
        %781 = vmatmul.bf16.gmra.mxu0 %v704
        %v782 = vpop.f32.mrf.mxu0
        %v783 = vadd.f32 %v723, %v782
        %v784 = vpop.f32.mrf.mxu0
        %v785 = vadd.f32 %v723, %v784
        %786 = vdwg.mxu0
        %v787 = vmax.f32 %v783, 0.0
        %v788 = vmax.f32 %v785, 0.0
        %v789 = vpack.c.bf16 %v788, %v787
        %v790 = vld [vmem:[#allocation13] sm:$0xff]
        %v791 = vld [vmem:[#allocation13 + $0x8] sm:$0xff]
        %v792 = vld [vmem:[#allocation13 + $0x10] sm:$0xff]
        %v793 = vld [vmem:[#allocation13 + $0x18] sm:$0xff]
        %v794 = vld [vmem:[#allocation13 + $0x20] sm:$0xff]
        %v795 = vld [vmem:[#allocation13 + $0x28] sm:$0xff]
        %v796 = vld [vmem:[#allocation13 + $0x30] sm:$0xff]
        %v797 = vld [vmem:[#allocation13 + $0x38] sm:$0xff]
        %v798 = vld [vmem:[#allocation13 + $0x40] sm:$0xff]
        %v799 = vld [vmem:[#allocation13 + $0x48] sm:$0xff]
        %v800 = vld [vmem:[#allocation13 + $0x50] sm:$0xff]
        %v801 = vld [vmem:[#allocation13 + $0x58] sm:$0xff]
        %v802 = vld [vmem:[#allocation13 + $0x60] sm:$0xff]
        %v803 = vld [vmem:[#allocation13 + $0x68] sm:$0xff]
        %v804 = vld [vmem:[#allocation13 + $0x70] sm:$0xff]
        %v805 = vld [vmem:[#allocation13 + $0x78] sm:$0xff]
        %v806 = vld [vmem:[%s8] sm:$0x3]
        %v808 = vperm.slane %v806, 0
        %v809 = vperm.slane %v806, 1
        %v828 = vunpack.c.l.b16 %v790
        %v829 = vunpack.c.h.b16 %v790
        %v830 = vunpack.c.l.b16 %v791
        %v831 = vunpack.c.h.b16 %v791
        %v832 = vunpack.c.l.b16 %v792
        %v833 = vunpack.c.h.b16 %v792
        %v834 = vunpack.c.l.b16 %v793
        %v835 = vunpack.c.h.b16 %v793
        %v836 = vunpack.c.l.b16 %v794
        %v837 = vunpack.c.h.b16 %v794
        %v838 = vunpack.c.l.b16 %v795
        %v839 = vunpack.c.h.b16 %v795
        %v840 = vunpack.c.l.b16 %v796
        %v841 = vunpack.c.h.b16 %v796
        %v842 = vunpack.c.l.b16 %v797
        %v843 = vunpack.c.h.b16 %v797
        %v844 = vunpack.c.l.b16 %v798
        %v845 = vunpack.c.h.b16 %v798
        %v846 = vunpack.c.l.b16 %v799
        %v847 = vunpack.c.h.b16 %v799
        %v848 = vunpack.c.l.b16 %v800
        %v849 = vunpack.c.h.b16 %v800
        %v850 = vunpack.c.l.b16 %v801
        %v851 = vunpack.c.h.b16 %v801
        %v852 = vunpack.c.l.b16 %v802
        %v853 = vunpack.c.h.b16 %v802
        %v854 = vunpack.c.l.b16 %v803
        %v855 = vunpack.c.h.b16 %v803
        %v856 = vunpack.c.l.b16 %v804
        %v857 = vunpack.c.h.b16 %v804
        %v858 = vunpack.c.l.b16 %v805
        %v859 = vunpack.c.h.b16 %v805
        %v860 = vpack.c.b16 %v830, %v828
        %v861 = vpack.c.b16 %v831, %v829
        %v862 = vpack.c.b16 %v834, %v832
        %v863 = vpack.c.b16 %v835, %v833
        %v864 = vpack.c.b16 %v838, %v836
        %v865 = vpack.c.b16 %v839, %v837
        %v866 = vpack.c.b16 %v842, %v840
        %v867 = vpack.c.b16 %v843, %v841
        %v868 = vpack.c.b16 %v846, %v844
        %v869 = vpack.c.b16 %v847, %v845
        %v870 = vpack.c.b16 %v850, %v848
        %v871 = vpack.c.b16 %v851, %v849
        %v872 = vpack.c.b16 %v854, %v852
        %v873 = vpack.c.b16 %v855, %v853
        %v874 = vpack.c.b16 %v858, %v856
        %v875 = vpack.c.b16 %v859, %v857
        %892 = vmatpush.bf16.msra.mxu0 %v874
        %893 = vmatpush.bf16.msra.mxu0 %v872
        %894 = vmatpush.bf16.msra.mxu0 %v870
        %895 = vmatpush.bf16.msra.mxu0 %v868
        %896 = vmatpush.bf16.msra.mxu0 %v866
        %897 = vmatpush.bf16.msra.mxu0 %v864
        %898 = vmatpush.bf16.msra.mxu0 %v862
        %899 = vmatpush.bf16.msra.mxu0 %v860
        %900 = vmatmul.bf16.gmra.mxu0 %v789
        %v901 = vpop.f32.mrf.mxu0
        %v902 = vadd.f32 %v808, %v901
        %v903 = vpop.f32.mrf.mxu0
        %v904 = vadd.f32 %v808, %v903
        %905 = vdwg.mxu0
        %906 = vmatpush.bf16.msra.mxu0 %v875
        %907 = vmatpush.bf16.msra.mxu0 %v873
        %908 = vmatpush.bf16.msra.mxu0 %v871
        %909 = vmatpush.bf16.msra.mxu0 %v869
        %910 = vmatpush.bf16.msra.mxu0 %v867
        %911 = vmatpush.bf16.msra.mxu0 %v865
        %912 = vmatpush.bf16.msra.mxu0 %v863
        %913 = vmatpush.bf16.msra.mxu0 %v861
        %914 = vmatmul.bf16.gmra.mxu0 %v789
        %v915 = vpop.f32.mrf.mxu0
        %v916 = vadd.f32 %v809, %v915
        %v917 = vpop.f32.mrf.mxu0
        %v918 = vadd.f32 %v809, %v917
        %919 = vdwg.mxu0
        %v920 = vmax.f32 %v902, 0.0
        %v921 = vmax.f32 %v916, 0.0
        %v922 = vmax.f32 %v904, 0.0
        %v923 = vmax.f32 %v918, 0.0
        %924 = vst [vmem:[%s448] sm:$0xff] %v920
        %925 = vst [vmem:[%s448 + $0x8] sm:$0xff] %v921
        %926 = vst [vmem:[%s448 + $0x10] sm:$0xff] %v922
        %927 = vst [vmem:[%s448 + $0x18] sm:$0xff] %v923
        %s928 = sand.u32 %s231, 1
        %s929 = scalar_lea.sflag [#allocation4], %s928
        %s930 = sand.u32 %s231, 1
        %s931 = smul.addr %s930, 32
        %s932 = scalar_lea.vmem [#allocation14], %s931
        // Predicated region
        $region85: #{ae_forward.1} parent=55 // pred_check
          %p933 = pneg %p241
        $region86: #{ae_forward.1} parent=55 // pred_check_branch
          %935 = sbr.rel (%p933) target = $region88
        $region87: #{ae_forward.1} parent=55 // pred_region
          %s936 = smul.u32 2, %s29
          %938 = vsyncadd %s929, 0
          %s939 = smul.addr %s936, 2
          %s940 = smul.addr %s939, 8
          %s941 = scalar_lea.hbm %s9, %s940
          %s942 = sshll.u32 %s932, 4
          %s943 = int_to_ptr.vmem [resolvable:$true] %s942
          %s944 = sshll.u32 %s941, 4
          %s945 = int_to_ptr.hbm [resolvable:$true] %s944
          %950 = dma.vmem_to_hbm [thread:$0]  %s943, 512, %s945, %s929, 256, 256, 16
        $region88: #{ae_forward.1} parent=55 // pred_fallthru
          _
      $region56: #{ae_forward.1} parent=5 // pred_fallthru
        _
      %p951 = scmp.le.s32.totalorder 2, %s24
      // Predicated region
      $region89: #{ae_forward.1} parent=5 // pred_check
        %p952 = pneg %p951
      $region90: #{ae_forward.1} parent=5 // pred_check_branch
        %954 = sbr.rel (%p952) target = $region92
      $region91: #{ae_forward.1} parent=5 // pred_region
        %s955 = ssub.s32 %s24, 2
        // Predicated region
        $region93: #{ae_forward.1} parent=91 // pred_check
          %p956 = pneg %p247
        $region94: #{ae_forward.1} parent=91 // pred_check_branch
          %958 = sbr.rel (%p956) target = $region96
        $region95: #{ae_forward.1} parent=91 // pred_region
          %s959 = sand.u32 %s232, 1
          %s960 = scalar_lea.sflag [#allocation4], %s959
          %s961 = sand.u32 %s232, 1
          %s962 = smul.addr %s961, 32
          %s963 = scalar_lea.vmem [#allocation14], %s962
          %965 = dma.done %s960, 512
        $region96: #{ae_forward.1} parent=91 // pred_fallthru
          _
      $region92: #{ae_forward.1} parent=5 // pred_fallthru
        _
    $region6: #{ae_forward.1} parent=1 // loop_footer
      %s28 = sadd.s32 1, %s24
    $region7: #{ae_forward.1} parent=1 // loop_footer_branch
      %23 = sbr.rel target = $region3
    $region8: #{ae_forward.1} parent=1 // loop_exit
      _
    %966 = vsyncpa [#allocation3], 1
    %s967 = scalar_lea.sflag [#allocation3], 1
    %968 = vsyncpa %s967, 1
    %969 = vsyncpa [#allocation6], 1
    %970 = vsyncpa [#allocation9], 1
    %971 = vsyncpa [#allocation12], 1
    %972 = vsyncpa [#allocation4], 1
    %s973 = scalar_lea.sflag [#allocation4], 1
    %974 = vsyncpa %s973, 1

</llo_original>
